<compile_context>
chip_gen: v7x
topology: tpu7x:2x2x1
jax: 0.10.0
libtpu: 0.0.40
codegen_flags: <defaults>
</compile_context>

<pallas_src>
import jax
import jax.numpy as jnp
from jax.experimental import pallas as pl
from jax.experimental.pallas import tpu as pltpu


def _gcn_block_kernel(x_ref, a_ref, w_ref, b_ref, o_ref):
    """One batch-block of the graph convolution + ReLU (all tiles 2-D).

    x_ref: (bb*N, T*Fin)    bf16 node features, batch-major rows (streamed)
    a_ref: (bb*N, bb*N)     bf16 block-diagonal kron(I_bb, A_hat) (resident)
    w_ref: (T*Fin, T*Fout)  bf16 block-diagonal kron(I_T, W)      (resident)
    b_ref: (1, T*Fout)      f32 bias tiled over time              (resident)
    o_ref: (bb*N, T*Fout)   output block (lane-dense last dim)
    """
    # Transform first: the intermediate and output are T*Fout (=128) lanes wide.
    h = jnp.dot(x_ref[...], w_ref[...], preferred_element_type=jnp.float32)
    # Aggregate over all bb graphs with ONE wide MXU matmul (A is block-diag).
    y = jnp.dot(a_ref[...], h.astype(jnp.bfloat16),
                preferred_element_type=jnp.float32)
    # bias + ReLU in f32, single broadcast per grid step.
    o_ref[...] = jnp.maximum(y + b_ref[...], 0.0).astype(o_ref.dtype)


def gcn_block_forward(X, adj, W, b, *, normalize=True, batch_block=None):
    """Pallas implementation of GCNBlock.forward.

    X:   (B, N, T, Fin)   -> returns (B, N, T, Fout)
    adj: (N, N) binary adjacency ("g" graph information)
    """
    B, N, T, Fin = X.shape
    Fout = W.shape[1]
    TFin, TFout = T * Fin, T * Fout
    f32 = jnp.float32

    # --- adjacency normalization (parameter-like, tiny, plain JAX) ---
    a_hat = adj.astype(f32) + jnp.eye(N, dtype=f32)
    if normalize:
        d_inv_sqrt = 1.0 / jnp.sqrt(jnp.sum(a_hat, axis=1))   # deg >= 1 (self loops)
        a_hat = a_hat * d_inv_sqrt[:, None] * d_inv_sqrt[None, :]

    # Block-diagonal weight: applies W independently per timestep on the
    # flattened (T*Fin) lane axis; keeps the kernel free of relayouts.
    w_big = jnp.kron(jnp.eye(T, dtype=f32), W.astype(f32)).astype(jnp.bfloat16)
    b_big = jnp.tile(b.astype(f32), T).reshape(1, TFout)

    # --- batch-block size: as large as fits (whole batch at demo shapes) ---
    if batch_block is None:
        batch_block = B
    bb = max(1, min(int(batch_block), B, max(1, 1024 // N)))
    if N % 8 != 0:
        # fall back to a single block so every block dim equals the full array dim
        bb = B

    out_isize = jnp.dtype(X.dtype).itemsize
    vmem_budget = 20 * 1024 * 1024     # headroom under the 32 MiB scoped limit

    def _fits(bb_):
        rows = bb_ * N
        streamed = 2 * rows * (TFin * 2 + TFout * out_isize)          # dbl-buffered x + out
        resident = 2 * (rows * rows * 2 + TFin * TFout * 2 + TFout * 4)  # A_blk, W_big, bias
        return streamed + resident <= vmem_budget

    while bb > 1 and not _fits(bb):
        bb -= 1
    bb = int(bb)

    n_blocks = int(pl.cdiv(B, bb))
    B_pad = n_blocks * bb

    # Block-diagonal adjacency: aggregates all bb graphs in one MXU matmul.
    a_blk = jnp.kron(jnp.eye(bb, dtype=f32), a_hat).astype(jnp.bfloat16)

    x_rows = X.reshape(B * N, TFin).astype(jnp.bfloat16)   # free reshape, no transpose
    if B_pad != B:
        x_rows = jnp.pad(x_rows, ((0, (B_pad - B) * N), (0, 0)))

    out = pl.pallas_call(
        _gcn_block_kernel,
        out_shape=jax.ShapeDtypeStruct((B_pad * N, TFout), X.dtype),
        grid=(n_blocks,),
        in_specs=[
            pl.BlockSpec((bb * N, TFin), lambda i: (i, 0)),     # streamed activations
            pl.BlockSpec((bb * N, bb * N), lambda i: (0, 0)),   # kron(I_bb, A_hat), resident
            pl.BlockSpec((TFin, TFout), lambda i: (0, 0)),      # kron(I_T, W), resident
            pl.BlockSpec((1, TFout), lambda i: (0, 0)),         # bias, resident
        ],
        out_specs=pl.BlockSpec((bb * N, TFout), lambda i: (i, 0)),
        compiler_params=pltpu.CompilerParams(
            dimension_semantics=("parallel",),
            vmem_limit_bytes=32 * 1024 * 1024,   # < v7x 64 MiB physical, > v5e 16 MiB default
        ),
    )(x_rows, a_blk, w_big, b_big)

    # back to (B, N, T, Fout): slice off batch padding, free reshape only
    return out[: B * N].reshape(B, N, T, Fout)


def _reference(X, adj, W, b, *, normalize=True):
    """Pure-JAX f32 reference of the module semantics, for correctness check."""
    B, N, T, Fin = X.shape
    a_hat = adj.astype(jnp.float32) + jnp.eye(N, dtype=jnp.float32)
    if normalize:
        d_inv_sqrt = 1.0 / jnp.sqrt(jnp.sum(a_hat, axis=1))
        a_hat = a_hat * d_inv_sqrt[:, None] * d_inv_sqrt[None, :]
    t1 = jnp.transpose(X, (1, 0, 2, 3)).reshape(N, B * T, Fin)
    h = jnp.einsum('nmf,fo->nmo', t1, W)
    y = jnp.einsum('nk,kmo->nmo', a_hat, h) + b[None, None, :]
    t2 = jnp.maximum(y, 0.0)
    return jnp.transpose(t2.reshape(N, B, T, -1), (1, 0, 2, 3))


if __name__ == "__main__":
    key = jax.random.PRNGKey(0)
    kx, ka, kw, kb = jax.random.split(key, 4)

    # small shapes consistent with the module's forward
    B, N, T, Fin, Fout = 16, 16, 8, 4, 16

    X = jax.random.normal(kx, (B, N, T, Fin), dtype=jnp.float32)

    # deterministic random undirected graph
    upper = (jax.random.uniform(ka, (N, N)) < 0.4).astype(jnp.float32)
    upper = jnp.triu(upper, k=1)
    adj = upper + upper.T

    # deterministic parameter init (Kaiming-ish weight, small bias)
    W = jax.random.normal(kw, (Fin, Fout), dtype=jnp.float32) * (2.0 / Fin) ** 0.5
    b = jax.random.normal(kb, (Fout,), dtype=jnp.float32) * 0.01

    out = gcn_block_forward(X, adj, W, b, normalize=True)
    out = jax.block_until_ready(out)

    assert out.shape == (B, N, T, Fout), out.shape
    ref = _reference(X, adj, W, b, normalize=True)
    # bf16 MXU operands (f32 accumulation) -> loosened tolerance vs f32 reference
    max_err = float(jnp.max(jnp.abs(out - ref)))
    assert jnp.allclose(out, ref, rtol=3e-2, atol=3e-2), max_err

    print("KERNEL_OK")
</pallas_src>

<mosaic_0001>
module attributes {stable_mosaic.version = 11 : i64} {
  func.func @_gcn_block_kernel(%arg0: i32, %arg1: memref<256x32xbf16, #tpu.memory_space<vmem>>, %arg2: memref<256x256xbf16, #tpu.memory_space<vmem>>, %arg3: memref<32x128xbf16, #tpu.memory_space<vmem>>, %arg4: memref<1x128xf32, #tpu.memory_space<vmem>>, %arg5: memref<256x128xf32, #tpu.memory_space<vmem>>) attributes {dimension_semantics = [#tpu.dimension_semantics<parallel>], iteration_bounds = array<i64: 1>, scalar_prefetch = 0 : i64, scratch_operands = 0 : i64, tpu.core_type = #tpu.core_type<tc>, window_params = [{transform_indices = @transform_0, window_bounds = array<i64: 256, 32>}, {pipeline_mode = #tpu.pipeline_mode<synchronous>, transform_indices = @transform_1, window_bounds = array<i64: 256, 256>}, {pipeline_mode = #tpu.pipeline_mode<synchronous>, transform_indices = @transform_2, window_bounds = array<i64: 32, 128>}, {pipeline_mode = #tpu.pipeline_mode<synchronous>, transform_indices = @transform_3, window_bounds = array<i64: 1, 128>}, {transform_indices = @transform_4, window_bounds = array<i64: 256, 128>}]} {
    %c0 = arith.constant 0 : index
    %c0_0 = arith.constant 0 : index
    %0 = vector.load %arg1[%c0, %c0_0] : memref<256x32xbf16, #tpu.memory_space<vmem>>, vector<256x32xbf16>
    %c0_1 = arith.constant 0 : index
    %c0_2 = arith.constant 0 : index
    %1 = vector.load %arg3[%c0_1, %c0_2] : memref<32x128xbf16, #tpu.memory_space<vmem>>, vector<32x128xbf16>
    %cst = arith.constant dense<0.000000e+00> : vector<256x128xf32>
    %2 = tpu.matmul %0, %1, %cst {dimension_numbers = #tpu.dot_dimension_numbers<[1], [0], [0], [1], [0, 0, 1, 1], [], []>} : vector<256x32xbf16>, vector<32x128xbf16>, vector<256x128xf32> -> vector<256x128xf32>
    %c0_3 = arith.constant 0 : index
    %c0_4 = arith.constant 0 : index
    %3 = vector.load %arg2[%c0_3, %c0_4] : memref<256x256xbf16, #tpu.memory_space<vmem>>, vector<256x256xbf16>
    %4 = arith.truncf %2 : vector<256x128xf32> to vector<256x128xbf16>
    %cst_5 = arith.constant dense<0.000000e+00> : vector<256x128xf32>
    %5 = tpu.matmul %3, %4, %cst_5 {dimension_numbers = #tpu.dot_dimension_numbers<[1], [0], [0], [1], [0, 0, 1, 1], [], []>} : vector<256x256xbf16>, vector<256x128xbf16>, vector<256x128xf32> -> vector<256x128xf32>
    %c0_6 = arith.constant 0 : index
    %c0_7 = arith.constant 0 : index
    %6 = vector.load %arg4[%c0_6, %c0_7] : memref<1x128xf32, #tpu.memory_space<vmem>>, vector<1x128xf32>
    %7 = vector.broadcast %6 : vector<1x128xf32> to vector<256x128xf32>
    %8 = arith.addf %5, %7 : vector<256x128xf32>
    %cst_8 = arith.constant 0.000000e+00 : f32
    %9 = vector.broadcast %cst_8 : f32 to vector<256x128xf32>
    %10 = arith.maximumf %8, %9 : vector<256x128xf32>
    %c0_9 = arith.constant 0 : index
    %c0_10 = arith.constant 0 : index
    %11 = vector.load %arg5[%c0_9, %c0_10] : memref<256x128xf32, #tpu.memory_space<vmem>>, vector<256x128xf32>
    tpu.vector_store %arg5[%c0_9, %c0_10], %10 {strides = array<i32>} : memref<256x128xf32, #tpu.memory_space<vmem>>, vector<256x128xf32>,
    return
  }
  func.func @transform_0(%arg0: i32) -> (i32, i32) {
    %c0_i32 = arith.constant 0 : i32
    %c0_i32_0 = arith.constant 0 : i32
    return %arg0, %c0_i32 : i32, i32
  }
  func.func @transform_1(%arg0: i32) -> (i32, i32) {
    %c0_i32 = arith.constant 0 : i32
    %c0_i32_0 = arith.constant 0 : i32
    %c0_i32_1 = arith.constant 0 : i32
    return %c0_i32, %c0_i32_0 : i32, i32
  }
  func.func @transform_2(%arg0: i32) -> (i32, i32) {
    %c0_i32 = arith.constant 0 : i32
    %c0_i32_0 = arith.constant 0 : i32
    %c0_i32_1 = arith.constant 0 : i32
    return %c0_i32, %c0_i32_0 : i32, i32
  }
  func.func @transform_3(%arg0: i32) -> (i32, i32) {
    %c0_i32 = arith.constant 0 : i32
    %c0_i32_0 = arith.constant 0 : i32
    %c0_i32_1 = arith.constant 0 : i32
    return %c0_i32, %c0_i32_0 : i32, i32
  }
  func.func @transform_4(%arg0: i32) -> (i32, i32) {
    %c0_i32 = arith.constant 0 : i32
    %c0_i32_0 = arith.constant 0 : i32
    return %arg0, %c0_i32 : i32, i32
  }
}

</mosaic_0001>

<llo_original>
// kernel: tpu_custom_call.1
$region0: #{tpu_custom_call.1}
  #allocation0 [shape = 'u32[]', space=smem, size = 0x4, offset = 0x4, fixed_abs, tag = 'smem constant byte address 0x4 - core index']
  #allocation1 [shape = 'u32[144,128]{1,0:T(1,128)}', space=vmem, size = 0x12000, scoped, tag = 'internal scratch']
  %s0 = inlined_call_operand.vmem [shape: bf16[256,32], index: 0, kind: input, shape index: {}]
  %s1 = inlined_call_operand.hbm [shape: bf16[256,256], index: 1, kind: input, shape index: {}]
  %s2 = inlined_call_operand.vmem [shape: bf16[32,128], index: 2, kind: input, shape index: {}]
  %s3 = inlined_call_operand.vmem [shape: f32[1,128], index: 3, kind: input, shape index: {}]
  %s4 = inlined_call_operand.hbm [shape: f32[256,128], index: 4, kind: output, shape index: {}]
  %s5 = sld [smem:[#allocation0]]
  $region30: #{tpu_custom_call.1} parent=0
    _
  %s7 = ssub.s32 1, %s5
  %s8 = scalar_select 0, %s7, %s5
  $region1: #{tpu_custom_call.1} parent=0
    #allocation2 [shape = 'u8[131072]{0}', space=vmem, size = 0x20000, scoped, tag = 'input window, operand 1, single buffered']
    #allocation3 [shape = 's32[1]{0}', space=sflag, size = 0x4, scoped, tag = 'scoped memory for tpu_custom_call.1']
    #allocation4 [shape = 's32[1]{0}', space=sflag, size = 0x4, scoped, tag = 'scoped memory for tpu_custom_call.1']
    #allocation5 [shape = 'u8[131072]{0}', space=vmem, size = 0x20000, scoped, tag = 'output window, operand 0, single buffered']
    %9 = vsyncpa [#allocation3], 0
    %10 = vsyncpa [#allocation4], 0
    // Predicated region
    $region2: #{tpu_custom_call.1} parent=1 // pred_check
      _
    $region3: #{tpu_custom_call.1} parent=1 // pred_check_branch
      %12 = sbr.rel (0) target = $region5
    $region4: #{tpu_custom_call.1} parent=1 // pred_region
      _
    $region5: #{tpu_custom_call.1} parent=1 // pred_fallthru
      _
    // Predicated region
    $region6: #{tpu_custom_call.1} parent=1 // pred_check
      _
    $region7: #{tpu_custom_call.1} parent=1 // pred_check_branch
      %14 = sbr.rel (0) target = $region9
    $region8: #{tpu_custom_call.1} parent=1 // pred_region
      %s16 = ssub.s32 4096, 4096
      %17 = vsyncadd [#allocation3], %s16
      %s18 = sshll.u32 [#allocation2], 4
      %s19 = int_to_ptr.vmem [resolvable:$true] %s18
      %24 = dma.hbm_to_vmem [thread:$0]  %s1, 4096, %s19, [#allocation3], 128, 128, 8
    $region9: #{tpu_custom_call.1} parent=1 // pred_fallthru
      _
    // Predicated region
    $region10: #{tpu_custom_call.1} parent=1 // pred_check
      _
    $region11: #{tpu_custom_call.1} parent=1 // pred_check_branch
      %26 = sbr.rel (0) target = $region13
    $region12: #{tpu_custom_call.1} parent=1 // pred_region
      _
    $region13: #{tpu_custom_call.1} parent=1 // pred_fallthru
      _
    // Predicated region
    $region14: #{tpu_custom_call.1} parent=1 // pred_check
      _
    $region15: #{tpu_custom_call.1} parent=1 // pred_check_branch
      %28 = sbr.rel (0) target = $region17
    $region16: #{tpu_custom_call.1} parent=1 // pred_region
      _
    $region17: #{tpu_custom_call.1} parent=1 // pred_fallthru
      _
    // Predicated region
    $region18: #{tpu_custom_call.1} parent=1 // pred_check
      _
    $region19: #{tpu_custom_call.1} parent=1 // pred_check_branch
      %30 = sbr.rel (0) target = $region21
    $region20: #{tpu_custom_call.1} parent=1 // pred_region
      %31 = dma.done [#allocation3], 4096
    $region21: #{tpu_custom_call.1} parent=1 // pred_fallthru
      _
    %v33 = vld [vmem:[%s0] sm:$0xf]
    %v34 = vld [vmem:[%s0 + $0x4] sm:$0xf]
    %v35 = vld [vmem:[%s0 + $0x8] sm:$0xf]
    %v36 = vld [vmem:[%s0 + $0xc] sm:$0xf]
    %v37 = vld [vmem:[%s0 + $0x10] sm:$0xf]
    %v38 = vld [vmem:[%s0 + $0x14] sm:$0xf]
    %v39 = vld [vmem:[%s0 + $0x18] sm:$0xf]
    %v40 = vld [vmem:[%s0 + $0x1c] sm:$0xf]
    %v41 = vld [vmem:[%s0 + $0x20] sm:$0xf]
    %v42 = vld [vmem:[%s0 + $0x24] sm:$0xf]
    %v43 = vld [vmem:[%s0 + $0x28] sm:$0xf]
    %v44 = vld [vmem:[%s0 + $0x2c] sm:$0xf]
    %v45 = vld [vmem:[%s0 + $0x30] sm:$0xf]
    %v46 = vld [vmem:[%s0 + $0x34] sm:$0xf]
    %v47 = vld [vmem:[%s0 + $0x38] sm:$0xf]
    %v48 = vld [vmem:[%s0 + $0x3c] sm:$0xf]
    %v49 = vld [vmem:[%s0 + $0x40] sm:$0xf]
    %v50 = vld [vmem:[%s0 + $0x44] sm:$0xf]
    %v51 = vld [vmem:[%s0 + $0x48] sm:$0xf]
    %v52 = vld [vmem:[%s0 + $0x4c] sm:$0xf]
    %v53 = vld [vmem:[%s0 + $0x50] sm:$0xf]
    %v54 = vld [vmem:[%s0 + $0x54] sm:$0xf]
    %v55 = vld [vmem:[%s0 + $0x58] sm:$0xf]
    %v56 = vld [vmem:[%s0 + $0x5c] sm:$0xf]
    %v57 = vld [vmem:[%s0 + $0x60] sm:$0xf]
    %v58 = vld [vmem:[%s0 + $0x64] sm:$0xf]
    %v59 = vld [vmem:[%s0 + $0x68] sm:$0xf]
    %v60 = vld [vmem:[%s0 + $0x6c] sm:$0xf]
    %v61 = vld [vmem:[%s0 + $0x70] sm:$0xf]
    %v62 = vld [vmem:[%s0 + $0x74] sm:$0xf]
    %v63 = vld [vmem:[%s0 + $0x78] sm:$0xf]
    %v64 = vld [vmem:[%s0 + $0x7c] sm:$0xf]
    %v65 = vld [vmem:[%s2] sm:$0xf]
    %v66 = vld [vmem:[%s2 + $0x4] sm:$0xf]
    %v67 = vld [vmem:[%s2 + $0x8] sm:$0xf]
    %v68 = vld [vmem:[%s2 + $0xc] sm:$0xf]
    %v101 = vunpack.c.l.b16 %v33
    %v102 = vunpack.c.l.b16 %v34
    %v103 = vunpack.c.l.b16 %v35
    %v104 = vunpack.c.l.b16 %v36
    %v105 = vunpack.c.l.b16 %v37
    %v106 = vunpack.c.l.b16 %v38
    %v107 = vunpack.c.l.b16 %v39
    %v108 = vunpack.c.l.b16 %v40
    %v109 = vunpack.c.l.b16 %v41
    %v110 = vunpack.c.l.b16 %v42
    %v111 = vunpack.c.l.b16 %v43
    %v112 = vunpack.c.l.b16 %v44
    %v113 = vunpack.c.l.b16 %v45
    %v114 = vunpack.c.l.b16 %v46
    %v115 = vunpack.c.l.b16 %v47
    %v116 = vunpack.c.l.b16 %v48
    %v117 = vunpack.c.l.b16 %v49
    %v118 = vunpack.c.l.b16 %v50
    %v119 = vunpack.c.l.b16 %v51
    %v120 = vunpack.c.l.b16 %v52
    %v121 = vunpack.c.l.b16 %v53
    %v122 = vunpack.c.l.b16 %v54
    %v123 = vunpack.c.l.b16 %v55
    %v124 = vunpack.c.l.b16 %v56
    %v125 = vunpack.c.l.b16 %v57
    %v126 = vunpack.c.l.b16 %v58
    %v127 = vunpack.c.l.b16 %v59
    %v128 = vunpack.c.l.b16 %v60
    %v129 = vunpack.c.l.b16 %v61
    %v130 = vunpack.c.l.b16 %v62
    %v131 = vunpack.c.l.b16 %v63
    %v132 = vunpack.c.l.b16 %v64
    %v133 = vpack.c.b16 %v102, %v101
    %v134 = vpack.c.b16 %v104, %v103
    %v135 = vpack.c.b16 %v106, %v105
    %v136 = vpack.c.b16 %v108, %v107
    %v137 = vpack.c.b16 %v110, %v109
    %v138 = vpack.c.b16 %v112, %v111
    %v139 = vpack.c.b16 %v114, %v113
    %v140 = vpack.c.b16 %v116, %v115
    %v141 = vpack.c.b16 %v118, %v117
    %v142 = vpack.c.b16 %v120, %v119
    %v143 = vpack.c.b16 %v122, %v121
    %v144 = vpack.c.b16 %v124, %v123
    %v145 = vpack.c.b16 %v126, %v125
    %v146 = vpack.c.b16 %v128, %v127
    %v147 = vpack.c.b16 %v130, %v129
    %v148 = vpack.c.b16 %v132, %v131
    %v153 = vunpack.c.l.b16 %v65
    %v154 = vunpack.c.l.b16 %v66
    %v155 = vunpack.c.l.b16 %v67
    %v156 = vunpack.c.l.b16 %v68
    %v157 = vpack.c.b16 %v154, %v153
    %v158 = vpack.c.b16 %v156, %v155
    %vm161 = vcmask 261120
    %v163 = vsel %vm161, %v133, 0
    %v166 = vsel %vm161, %v134, 0
    %v169 = vsel %vm161, %v135, 0
    %v172 = vsel %vm161, %v136, 0
    %v175 = vsel %vm161, %v137, 0
    %v178 = vsel %vm161, %v138, 0
    %v181 = vsel %vm161, %v139, 0
    %v184 = vsel %vm161, %v140, 0
    %v187 = vsel %vm161, %v141, 0
    %v190 = vsel %vm161, %v142, 0
    %v193 = vsel %vm161, %v143, 0
    %v196 = vsel %vm161, %v144, 0
    %v199 = vsel %vm161, %v145, 0
    %v202 = vsel %vm161, %v146, 0
    %v205 = vsel %vm161, %v147, 0
    %v208 = vsel %vm161, %v148, 0
    %210 = vmatprep.subr.bf16.mxu0 0
    %211 = vmatpush1.bf16.msra.mxu0 %v157
    %212 = vmatprep.subr.bf16.mxu0 0
    %213 = vmatpush1.bf16.msra.mxu0 %v158
    %214 = vmatprep.subr.bf16.mxu0 0
    %215 = vmatpush1.bf16.msra.mxu0 0
    %216 = vmatprep.subr.bf16.mxu0 0
    %217 = vmatpush1.bf16.msra.mxu0 0
    %218 = vmatprep.subr.bf16.mxu0 0
    %219 = vmatpush1.bf16.msra.mxu0 0
    %220 = vmatprep.subr.bf16.mxu0 0
    %221 = vmatpush1.bf16.msra.mxu0 0
    %222 = vmatprep.subr.bf16.mxu0 0
    %223 = vmatpush1.bf16.msra.mxu0 0
    %224 = vmatprep.subr.bf16.mxu0 0
    %225 = vmatpush1.bf16.msra.mxu0 0
    %226 = vmatprep.subr.bf16.mxu0 0
    %227 = vmatpush1.bf16.msra.mxu0 0
    %228 = vmatprep.subr.bf16.mxu0 0
    %229 = vmatpush1.bf16.msra.mxu0 0
    %230 = vmatprep.subr.bf16.mxu0 0
    %231 = vmatpush1.bf16.msra.mxu0 0
    %232 = vmatprep.subr.bf16.mxu0 0
    %233 = vmatpush1.bf16.msra.mxu0 0
    %234 = vmatprep.subr.bf16.mxu0 0
    %235 = vmatpush1.bf16.msra.mxu0 0
    %236 = vmatprep.subr.bf16.mxu0 0
    %237 = vmatpush1.bf16.msra.mxu0 0
    %238 = vmatprep.subr.bf16.mxu0 0
    %239 = vmatpush1.bf16.msra.mxu0 0
    %240 = vmatprep.subr.bf16.mxu0 0
    %241 = vmatpush1.bf16.msra.mxu0 0
    %242 = vmatprep.mubr.bf16.mxu0 0
    %243 = vmatmul.mubr.bf16.gmra.mrb[0].mxu0 %v163
    %v244 = vpop.f32.mrb[0].mxu0
    %v245 = vadd.f32 0.0, %v244
    %v246 = vpop.f32.mrb[0].mxu0
    %v247 = vpop.f32.mrb[0].mxu0
    %v248 = vadd.f32 0.0, %v247
    %v249 = vpop.f32.mrb[0].mxu0
    %250 = vmatprep.mubr.bf16.mxu0 0
    %251 = vmatmul.mubr.bf16.gmra.mrb[0].mxu0 %v166
    %v252 = vpop.f32.mrb[0].mxu0
    %v253 = vadd.f32 0.0, %v252
    %v254 = vpop.f32.mrb[0].mxu0
    %v255 = vpop.f32.mrb[0].mxu0
    %v256 = vadd.f32 0.0, %v255
    %v257 = vpop.f32.mrb[0].mxu0
    %258 = vmatprep.mubr.bf16.mxu0 0
    %259 = vmatmul.mubr.bf16.gmra.mrb[0].mxu0 %v169
    %v260 = vpop.f32.mrb[0].mxu0
    %v261 = vadd.f32 0.0, %v260
    %v262 = vpop.f32.mrb[0].mxu0
    %v263 = vpop.f32.mrb[0].mxu0
    %v264 = vadd.f32 0.0, %v263
    %v265 = vpop.f32.mrb[0].mxu0
    %266 = vmatprep.mubr.bf16.mxu0 0
    %267 = vmatmul.mubr.bf16.gmra.mrb[0].mxu0 %v172
    %v268 = vpop.f32.mrb[0].mxu0
    %v269 = vadd.f32 0.0, %v268
    %v270 = vpop.f32.mrb[0].mxu0
    %v271 = vpop.f32.mrb[0].mxu0
    %v272 = vadd.f32 0.0, %v271
    %v273 = vpop.f32.mrb[0].mxu0
    %274 = vmatprep.mubr.bf16.mxu0 0
    %275 = vmatmul.mubr.bf16.gmra.mrb[0].mxu0 %v175
    %v276 = vpop.f32.mrb[0].mxu0
    %v277 = vadd.f32 0.0, %v276
    %v278 = vpop.f32.mrb[0].mxu0
    %v279 = vpop.f32.mrb[0].mxu0
    %v280 = vadd.f32 0.0, %v279
    %v281 = vpop.f32.mrb[0].mxu0
    %282 = vmatprep.mubr.bf16.mxu0 0
    %283 = vmatmul.mubr.bf16.gmra.mrb[0].mxu0 %v178
    %v284 = vpop.f32.mrb[0].mxu0
    %v285 = vadd.f32 0.0, %v284
    %v286 = vpop.f32.mrb[0].mxu0
    %v287 = vpop.f32.mrb[0].mxu0
    %v288 = vadd.f32 0.0, %v287
    %v289 = vpop.f32.mrb[0].mxu0
    %290 = vmatprep.mubr.bf16.mxu0 0
    %291 = vmatmul.mubr.bf16.gmra.mrb[0].mxu0 %v181
    %v292 = vpop.f32.mrb[0].mxu0
    %v293 = vadd.f32 0.0, %v292
    %v294 = vpop.f32.mrb[0].mxu0
    %v295 = vpop.f32.mrb[0].mxu0
    %v296 = vadd.f32 0.0, %v295
    %v297 = vpop.f32.mrb[0].mxu0
    %298 = vmatprep.mubr.bf16.mxu0 0
    %299 = vmatmul.mubr.bf16.gmra.mrb[0].mxu0 %v184
    %v300 = vpop.f32.mrb[0].mxu0
    %v301 = vadd.f32 0.0, %v300
    %v302 = vpop.f32.mrb[0].mxu0
    %v303 = vpop.f32.mrb[0].mxu0
    %v304 = vadd.f32 0.0, %v303
    %v305 = vpop.f32.mrb[0].mxu0
    %306 = vmatprep.mubr.bf16.mxu0 0
    %307 = vmatmul.mubr.bf16.gmra.mrb[0].mxu0 %v187
    %v308 = vpop.f32.mrb[0].mxu0
    %v309 = vadd.f32 0.0, %v308
    %v310 = vpop.f32.mrb[0].mxu0
    %v311 = vpop.f32.mrb[0].mxu0
    %v312 = vadd.f32 0.0, %v311
    %v313 = vpop.f32.mrb[0].mxu0
    %314 = vmatprep.mubr.bf16.mxu0 0
    %315 = vmatmul.mubr.bf16.gmra.mrb[0].mxu0 %v190
    %v316 = vpop.f32.mrb[0].mxu0
    %v317 = vadd.f32 0.0, %v316
    %v318 = vpop.f32.mrb[0].mxu0
    %v319 = vpop.f32.mrb[0].mxu0
    %v320 = vadd.f32 0.0, %v319
    %v321 = vpop.f32.mrb[0].mxu0
    %322 = vmatprep.mubr.bf16.mxu0 0
    %323 = vmatmul.mubr.bf16.gmra.mrb[0].mxu0 %v193
    %v324 = vpop.f32.mrb[0].mxu0
    %v325 = vadd.f32 0.0, %v324
    %v326 = vpop.f32.mrb[0].mxu0
    %v327 = vpop.f32.mrb[0].mxu0
    %v328 = vadd.f32 0.0, %v327
    %v329 = vpop.f32.mrb[0].mxu0
    %330 = vmatprep.mubr.bf16.mxu0 0
    %331 = vmatmul.mubr.bf16.gmra.mrb[0].mxu0 %v196
    %v332 = vpop.f32.mrb[0].mxu0
    %v333 = vadd.f32 0.0, %v332
    %v334 = vpop.f32.mrb[0].mxu0
    %v335 = vpop.f32.mrb[0].mxu0
    %v336 = vadd.f32 0.0, %v335
    %v337 = vpop.f32.mrb[0].mxu0
    %338 = vmatprep.mubr.bf16.mxu0 0
    %339 = vmatmul.mubr.bf16.gmra.mrb[0].mxu0 %v199
    %v340 = vpop.f32.mrb[0].mxu0
    %v341 = vadd.f32 0.0, %v340
    %v342 = vpop.f32.mrb[0].mxu0
    %v343 = vpop.f32.mrb[0].mxu0
    %v344 = vadd.f32 0.0, %v343
    %v345 = vpop.f32.mrb[0].mxu0
    %346 = vmatprep.mubr.bf16.mxu0 0
    %347 = vmatmul.mubr.bf16.gmra.mrb[0].mxu0 %v202
    %v348 = vpop.f32.mrb[0].mxu0
    %v349 = vadd.f32 0.0, %v348
    %v350 = vpop.f32.mrb[0].mxu0
    %v351 = vpop.f32.mrb[0].mxu0
    %v352 = vadd.f32 0.0, %v351
    %v353 = vpop.f32.mrb[0].mxu0
    %354 = vmatprep.mubr.bf16.mxu0 0
    %355 = vmatmul.mubr.bf16.gmra.mrb[0].mxu0 %v205
    %v356 = vpop.f32.mrb[0].mxu0
    %v357 = vadd.f32 0.0, %v356
    %v358 = vpop.f32.mrb[0].mxu0
    %v359 = vpop.f32.mrb[0].mxu0
    %v360 = vadd.f32 0.0, %v359
    %v361 = vpop.f32.mrb[0].mxu0
    %362 = vmatprep.mubr.bf16.mxu0 0
    %363 = vmatmul.mubr.bf16.gmra.mrb[0].mxu0 %v208
    %v364 = vpop.f32.mrb[0].mxu0
    %v365 = vadd.f32 0.0, %v364
    %v366 = vpop.f32.mrb[0].mxu0
    %v367 = vpop.f32.mrb[0].mxu0
    %v368 = vadd.f32 0.0, %v367
    %v369 = vpop.f32.mrb[0].mxu0
    %370 = vdwg.mxu0
    %v371 = vld [vmem:[#allocation2] sm:$0xff]
    %v372 = vld [vmem:[#allocation2 + $0x8] sm:$0xff]
    %v373 = vld [vmem:[#allocation2 + $0x10] sm:$0xff]
    %v374 = vld [vmem:[#allocation2 + $0x18] sm:$0xff]
    %v375 = vld [vmem:[#allocation2 + $0x20] sm:$0xff]
    %v376 = vld [vmem:[#allocation2 + $0x28] sm:$0xff]
    %v377 = vld [vmem:[#allocation2 + $0x30] sm:$0xff]
    %v378 = vld [vmem:[#allocation2 + $0x38] sm:$0xff]
    %v379 = vld [vmem:[#allocation2 + $0x40] sm:$0xff]
    %v380 = vld [vmem:[#allocation2 + $0x48] sm:$0xff]
    %v381 = vld [vmem:[#allocation2 + $0x50] sm:$0xff]
    %v382 = vld [vmem:[#allocation2 + $0x58] sm:$0xff]
    %v383 = vld [vmem:[#allocation2 + $0x60] sm:$0xff]
    %v384 = vld [vmem:[#allocation2 + $0x68] sm:$0xff]
    %v385 = vld [vmem:[#allocation2 + $0x70] sm:$0xff]
    %v386 = vld [vmem:[#allocation2 + $0x78] sm:$0xff]
    %v387 = vld [vmem:[#allocation2 + $0x80] sm:$0xff]
    %v388 = vld [vmem:[#allocation2 + $0x88] sm:$0xff]
    %v389 = vld [vmem:[#allocation2 + $0x90] sm:$0xff]
    %v390 = vld [vmem:[#allocation2 + $0x98] sm:$0xff]
    %v391 = vld [vmem:[#allocation2 + $0xa0] sm:$0xff]
    %v392 = vld [vmem:[#allocation2 + $0xa8] sm:$0xff]
    %v393 = vld [vmem:[#allocation2 + $0xb0] sm:$0xff]
    %v394 = vld [vmem:[#allocation2 + $0xb8] sm:$0xff]
    %v395 = vld [vmem:[#allocation2 + $0xc0] sm:$0xff]
    %v396 = vld [vmem:[#allocation2 + $0xc8] sm:$0xff]
    %v397 = vld [vmem:[#allocation2 + $0xd0] sm:$0xff]
    %v398 = vld [vmem:[#allocation2 + $0xd8] sm:$0xff]
    %v399 = vld [vmem:[#allocation2 + $0xe0] sm:$0xff]
    %v400 = vld [vmem:[#allocation2 + $0xe8] sm:$0xff]
    %v401 = vld [vmem:[#allocation2 + $0xf0] sm:$0xff]
    %v402 = vld [vmem:[#allocation2 + $0xf8] sm:$0xff]
    %v403 = vpack.c.bf16 %v248, %v245
    %v404 = vpack.c.bf16 %v256, %v253
    %v405 = vpack.c.bf16 %v264, %v261
    %v406 = vpack.c.bf16 %v272, %v269
    %v407 = vpack.c.bf16 %v280, %v277
    %v408 = vpack.c.bf16 %v288, %v285
    %v409 = vpack.c.bf16 %v296, %v293
    %v410 = vpack.c.bf16 %v304, %v301
    %v411 = vpack.c.bf16 %v312, %v309
    %v412 = vpack.c.bf16 %v320, %v317
    %v413 = vpack.c.bf16 %v328, %v325
    %v414 = vpack.c.bf16 %v336, %v333
    %v415 = vpack.c.bf16 %v344, %v341
    %v416 = vpack.c.bf16 %v352, %v349
    %v417 = vpack.c.bf16 %v360, %v357
    %v418 = vpack.c.bf16 %v368, %v365
    %v419 = vld [vmem:[%s3] sm:$0x1]
    %v421 = vlaneseq
    %v422 = vshrl.u32 %v421, 7
    %v423 = vsub.s32 0, %v422
    %v424 = vrot.slane %v419, %v423
    %v458 = vunpack.c.l.b16 %v371
    %v459 = vunpack.c.h.b16 %v371
    %v460 = vunpack.c.l.b16 %v372
    %v461 = vunpack.c.h.b16 %v372
    %v462 = vunpack.c.l.b16 %v373
    %v463 = vunpack.c.h.b16 %v373
    %v464 = vunpack.c.l.b16 %v374
    %v465 = vunpack.c.h.b16 %v374
    %v466 = vunpack.c.l.b16 %v375
    %v467 = vunpack.c.h.b16 %v375
    %v468 = vunpack.c.l.b16 %v376
    %v469 = vunpack.c.h.b16 %v376
    %v470 = vunpack.c.l.b16 %v377
    %v471 = vunpack.c.h.b16 %v377
    %v472 = vunpack.c.l.b16 %v378
    %v473 = vunpack.c.h.b16 %v378
    %v474 = vunpack.c.l.b16 %v379
    %v475 = vunpack.c.h.b16 %v379
    %v476 = vunpack.c.l.b16 %v380
    %v477 = vunpack.c.h.b16 %v380
    %v478 = vunpack.c.l.b16 %v381
    %v479 = vunpack.c.h.b16 %v381
    %v480 = vunpack.c.l.b16 %v382
    %v481 = vunpack.c.h.b16 %v382
    %v482 = vunpack.c.l.b16 %v383
    %v483 = vunpack.c.h.b16 %v383
    %v484 = vunpack.c.l.b16 %v384
    %v485 = vunpack.c.h.b16 %v384
    %v486 = vunpack.c.l.b16 %v385
    %v487 = vunpack.c.h.b16 %v385
    %v488 = vunpack.c.l.b16 %v386
    %v489 = vunpack.c.h.b16 %v386
    %v490 = vunpack.c.l.b16 %v387
    %v491 = vunpack.c.h.b16 %v387
    %v492 = vunpack.c.l.b16 %v388
    %v493 = vunpack.c.h.b16 %v388
    %v494 = vunpack.c.l.b16 %v389
    %v495 = vunpack.c.h.b16 %v389
    %v496 = vunpack.c.l.b16 %v390
    %v497 = vunpack.c.h.b16 %v390
    %v498 = vunpack.c.l.b16 %v391
    %v499 = vunpack.c.h.b16 %v391
    %v500 = vunpack.c.l.b16 %v392
    %v501 = vunpack.c.h.b16 %v392
    %v502 = vunpack.c.l.b16 %v393
    %v503 = vunpack.c.h.b16 %v393
    %v504 = vunpack.c.l.b16 %v394
    %v505 = vunpack.c.h.b16 %v394
    %v506 = vunpack.c.l.b16 %v395
    %v507 = vunpack.c.h.b16 %v395
    %v508 = vunpack.c.l.b16 %v396
    %v509 = vunpack.c.h.b16 %v396
    %v510 = vunpack.c.l.b16 %v397
    %v511 = vunpack.c.h.b16 %v397
    %v512 = vunpack.c.l.b16 %v398
    %v513 = vunpack.c.h.b16 %v398
    %v514 = vunpack.c.l.b16 %v399
    %v515 = vunpack.c.h.b16 %v399
    %v516 = vunpack.c.l.b16 %v400
    %v517 = vunpack.c.h.b16 %v400
    %v518 = vunpack.c.l.b16 %v401
    %v519 = vunpack.c.h.b16 %v401
    %v520 = vunpack.c.l.b16 %v402
    %v521 = vunpack.c.h.b16 %v402
    %v522 = vpack.c.b16 %v460, %v458
    %v523 = vpack.c.b16 %v461, %v459
    %v524 = vpack.c.b16 %v464, %v462
    %v525 = vpack.c.b16 %v465, %v463
    %v526 = vpack.c.b16 %v468, %v466
    %v527 = vpack.c.b16 %v469, %v467
    %v528 = vpack.c.b16 %v472, %v470
    %v529 = vpack.c.b16 %v473, %v471
    %v530 = vpack.c.b16 %v476, %v474
    %v531 = vpack.c.b16 %v477, %v475
    %v532 = vpack.c.b16 %v480, %v478
    %v533 = vpack.c.b16 %v481, %v479
    %v534 = vpack.c.b16 %v484, %v482
    %v535 = vpack.c.b16 %v485, %v483
    %v536 = vpack.c.b16 %v488, %v486
    %v537 = vpack.c.b16 %v489, %v487
    %v538 = vpack.c.b16 %v492, %v490
    %v539 = vpack.c.b16 %v493, %v491
    %v540 = vpack.c.b16 %v496, %v494
    %v541 = vpack.c.b16 %v497, %v495
    %v542 = vpack.c.b16 %v500, %v498
    %v543 = vpack.c.b16 %v501, %v499
    %v544 = vpack.c.b16 %v504, %v502
    %v545 = vpack.c.b16 %v505, %v503
    %v546 = vpack.c.b16 %v508, %v506
    %v547 = vpack.c.b16 %v509, %v507
    %v548 = vpack.c.b16 %v512, %v510
    %v549 = vpack.c.b16 %v513, %v511
    %v550 = vpack.c.b16 %v516, %v514
    %v551 = vpack.c.b16 %v517, %v515
    %v552 = vpack.c.b16 %v520, %v518
    %v553 = vpack.c.b16 %v521, %v519
    %586 = vmatprep.subr.bf16.mxu0 0
    %587 = vmatpush1.bf16.msra.mxu0 %v403
    %588 = vmatprep.subr.bf16.mxu0 0
    %589 = vmatpush1.bf16.msra.mxu0 %v404
    %590 = vmatprep.subr.bf16.mxu0 0
    %591 = vmatpush1.bf16.msra.mxu0 %v405
    %592 = vmatprep.subr.bf16.mxu0 0
    %593 = vmatpush1.bf16.msra.mxu0 %v406
    %594 = vmatprep.subr.bf16.mxu0 0
    %595 = vmatpush1.bf16.msra.mxu0 %v407
    %596 = vmatprep.subr.bf16.mxu0 0
    %597 = vmatpush1.bf16.msra.mxu0 %v408
    %598 = vmatprep.subr.bf16.mxu0 0
    %599 = vmatpush1.bf16.msra.mxu0 %v409
    %600 = vmatprep.subr.bf16.mxu0 0
    %601 = vmatpush1.bf16.msra.mxu0 %v410
    %602 = vmatprep.subr.bf16.mxu0 0
    %603 = vmatpush1.bf16.msra.mxu0 %v411
    %604 = vmatprep.subr.bf16.mxu0 0
    %605 = vmatpush1.bf16.msra.mxu0 %v412
    %606 = vmatprep.subr.bf16.mxu0 0
    %607 = vmatpush1.bf16.msra.mxu0 %v413
    %608 = vmatprep.subr.bf16.mxu0 0
    %609 = vmatpush1.bf16.msra.mxu0 %v414
    %610 = vmatprep.subr.bf16.mxu0 0
    %611 = vmatpush1.bf16.msra.mxu0 %v415
    %612 = vmatprep.subr.bf16.mxu0 0
    %613 = vmatpush1.bf16.msra.mxu0 %v416
    %614 = vmatprep.subr.bf16.mxu0 0
    %615 = vmatpush1.bf16.msra.mxu0 %v417
    %616 = vmatprep.subr.bf16.mxu0 0
    %617 = vmatpush1.bf16.msra.mxu0 %v418
    %618 = vmatprep.mubr.bf16.mxu0 %v523
    %619 = vmatmul.mubr.bf16.gmra.mrb[0].mxu0 %v522
    %v620 = vpop.f32.mrb[0].mxu0
    %v621 = vadd.f32 %v424, %v620
    %v622 = vpop.f32.mrb[0].mxu0
    %v623 = vpop.f32.mrb[0].mxu0
    %v624 = vadd.f32 %v424, %v623
    %v625 = vpop.f32.mrb[0].mxu0
    %626 = vmatprep.mubr.bf16.mxu0 %v525
    %627 = vmatmul.mubr.bf16.gmra.mrb[0].mxu0 %v524
    %v628 = vpop.f32.mrb[0].mxu0
    %v629 = vadd.f32 %v424, %v628
    %v630 = vpop.f32.mrb[0].mxu0
    %v631 = vpop.f32.mrb[0].mxu0
    %v632 = vadd.f32 %v424, %v631
    %v633 = vpop.f32.mrb[0].mxu0
    %634 = vmatprep.mubr.bf16.mxu0 %v527
    %635 = vmatmul.mubr.bf16.gmra.mrb[0].mxu0 %v526
    %v636 = vpop.f32.mrb[0].mxu0
    %v637 = vadd.f32 %v424, %v636
    %v638 = vpop.f32.mrb[0].mxu0
    %v639 = vpop.f32.mrb[0].mxu0
    %v640 = vadd.f32 %v424, %v639
    %v641 = vpop.f32.mrb[0].mxu0
    %642 = vmatprep.mubr.bf16.mxu0 %v529
    %643 = vmatmul.mubr.bf16.gmra.mrb[0].mxu0 %v528
    %v644 = vpop.f32.mrb[0].mxu0
    %v645 = vadd.f32 %v424, %v644
    %v646 = vpop.f32.mrb[0].mxu0
    %v647 = vpop.f32.mrb[0].mxu0
    %v648 = vadd.f32 %v424, %v647
    %v649 = vpop.f32.mrb[0].mxu0
    %650 = vmatprep.mubr.bf16.mxu0 %v531
    %651 = vmatmul.mubr.bf16.gmra.mrb[0].mxu0 %v530
    %v652 = vpop.f32.mrb[0].mxu0
    %v653 = vadd.f32 %v424, %v652
    %v654 = vpop.f32.mrb[0].mxu0
    %v655 = vpop.f32.mrb[0].mxu0
    %v656 = vadd.f32 %v424, %v655
    %v657 = vpop.f32.mrb[0].mxu0
    %658 = vmatprep.mubr.bf16.mxu0 %v533
    %659 = vmatmul.mubr.bf16.gmra.mrb[0].mxu0 %v532
    %v660 = vpop.f32.mrb[0].mxu0
    %v661 = vadd.f32 %v424, %v660
    %v662 = vpop.f32.mrb[0].mxu0
    %v663 = vpop.f32.mrb[0].mxu0
    %v664 = vadd.f32 %v424, %v663
    %v665 = vpop.f32.mrb[0].mxu0
    %666 = vmatprep.mubr.bf16.mxu0 %v535
    %667 = vmatmul.mubr.bf16.gmra.mrb[0].mxu0 %v534
    %v668 = vpop.f32.mrb[0].mxu0
    %v669 = vadd.f32 %v424, %v668
    %v670 = vpop.f32.mrb[0].mxu0
    %v671 = vpop.f32.mrb[0].mxu0
    %v672 = vadd.f32 %v424, %v671
    %v673 = vpop.f32.mrb[0].mxu0
    %674 = vmatprep.mubr.bf16.mxu0 %v537
    %675 = vmatmul.mubr.bf16.gmra.mrb[0].mxu0 %v536
    %v676 = vpop.f32.mrb[0].mxu0
    %v677 = vadd.f32 %v424, %v676
    %v678 = vpop.f32.mrb[0].mxu0
    %v679 = vpop.f32.mrb[0].mxu0
    %v680 = vadd.f32 %v424, %v679
    %v681 = vpop.f32.mrb[0].mxu0
    %682 = vmatprep.mubr.bf16.mxu0 %v539
    %683 = vmatmul.mubr.bf16.gmra.mrb[0].mxu0 %v538
    %v684 = vpop.f32.mrb[0].mxu0
    %v685 = vadd.f32 %v424, %v684
    %v686 = vpop.f32.mrb[0].mxu0
    %v687 = vpop.f32.mrb[0].mxu0
    %v688 = vadd.f32 %v424, %v687
    %v689 = vpop.f32.mrb[0].mxu0
    %690 = vmatprep.mubr.bf16.mxu0 %v541
    %691 = vmatmul.mubr.bf16.gmra.mrb[0].mxu0 %v540
    %v692 = vpop.f32.mrb[0].mxu0
    %v693 = vadd.f32 %v424, %v692
    %v694 = vpop.f32.mrb[0].mxu0
    %v695 = vpop.f32.mrb[0].mxu0
    %v696 = vadd.f32 %v424, %v695
    %v697 = vpop.f32.mrb[0].mxu0
    %698 = vmatprep.mubr.bf16.mxu0 %v543
    %699 = vmatmul.mubr.bf16.gmra.mrb[0].mxu0 %v542
    %v700 = vpop.f32.mrb[0].mxu0
    %v701 = vadd.f32 %v424, %v700
    %v702 = vpop.f32.mrb[0].mxu0
    %v703 = vpop.f32.mrb[0].mxu0
    %v704 = vadd.f32 %v424, %v703
    %v705 = vpop.f32.mrb[0].mxu0
    %706 = vmatprep.mubr.bf16.mxu0 %v545
    %707 = vmatmul.mubr.bf16.gmra.mrb[0].mxu0 %v544
    %v708 = vpop.f32.mrb[0].mxu0
    %v709 = vadd.f32 %v424, %v708
    %v710 = vpop.f32.mrb[0].mxu0
    %v711 = vpop.f32.mrb[0].mxu0
    %v712 = vadd.f32 %v424, %v711
    %v713 = vpop.f32.mrb[0].mxu0
    %714 = vmatprep.mubr.bf16.mxu0 %v547
    %715 = vmatmul.mubr.bf16.gmra.mrb[0].mxu0 %v546
    %v716 = vpop.f32.mrb[0].mxu0
    %v717 = vadd.f32 %v424, %v716
    %v718 = vpop.f32.mrb[0].mxu0
    %v719 = vpop.f32.mrb[0].mxu0
    %v720 = vadd.f32 %v424, %v719
    %v721 = vpop.f32.mrb[0].mxu0
    %722 = vmatprep.mubr.bf16.mxu0 %v549
    %723 = vmatmul.mubr.bf16.gmra.mrb[0].mxu0 %v548
    %v724 = vpop.f32.mrb[0].mxu0
    %v725 = vadd.f32 %v424, %v724
    %v726 = vpop.f32.mrb[0].mxu0
    %v727 = vpop.f32.mrb[0].mxu0
    %v728 = vadd.f32 %v424, %v727
    %v729 = vpop.f32.mrb[0].mxu0
    %730 = vmatprep.mubr.bf16.mxu0 %v551
    %731 = vmatmul.mubr.bf16.gmra.mrb[0].mxu0 %v550
    %v732 = vpop.f32.mrb[0].mxu0
    %v733 = vadd.f32 %v424, %v732
    %v734 = vpop.f32.mrb[0].mxu0
    %v735 = vpop.f32.mrb[0].mxu0
    %v736 = vadd.f32 %v424, %v735
    %v737 = vpop.f32.mrb[0].mxu0
    %738 = vmatprep.mubr.bf16.mxu0 %v553
    %739 = vmatmul.mubr.bf16.gmra.mrb[0].mxu0 %v552
    %v740 = vpop.f32.mrb[0].mxu0
    %v741 = vadd.f32 %v424, %v740
    %v742 = vpop.f32.mrb[0].mxu0
    %v743 = vpop.f32.mrb[0].mxu0
    %v744 = vadd.f32 %v424, %v743
    %v745 = vpop.f32.mrb[0].mxu0
    %746 = vdwg.mxu0
    %v747 = vmax.f32 %v621, 0.0
    %v748 = vmax.f32 %v624, 0.0
    %v749 = vmax.f32 %v629, 0.0
    %v750 = vmax.f32 %v632, 0.0
    %v751 = vmax.f32 %v637, 0.0
    %v752 = vmax.f32 %v640, 0.0
    %v753 = vmax.f32 %v645, 0.0
    %v754 = vmax.f32 %v648, 0.0
    %v755 = vmax.f32 %v653, 0.0
    %v756 = vmax.f32 %v656, 0.0
    %v757 = vmax.f32 %v661, 0.0
    %v758 = vmax.f32 %v664, 0.0
    %v759 = vmax.f32 %v669, 0.0
    %v760 = vmax.f32 %v672, 0.0
    %v761 = vmax.f32 %v677, 0.0
    %v762 = vmax.f32 %v680, 0.0
    %v763 = vmax.f32 %v685, 0.0
    %v764 = vmax.f32 %v688, 0.0
    %v765 = vmax.f32 %v693, 0.0
    %v766 = vmax.f32 %v696, 0.0
    %v767 = vmax.f32 %v701, 0.0
    %v768 = vmax.f32 %v704, 0.0
    %v769 = vmax.f32 %v709, 0.0
    %v770 = vmax.f32 %v712, 0.0
    %v771 = vmax.f32 %v717, 0.0
    %v772 = vmax.f32 %v720, 0.0
    %v773 = vmax.f32 %v725, 0.0
    %v774 = vmax.f32 %v728, 0.0
    %v775 = vmax.f32 %v733, 0.0
    %v776 = vmax.f32 %v736, 0.0
    %v777 = vmax.f32 %v741, 0.0
    %v778 = vmax.f32 %v744, 0.0
    %779 = vst [vmem:[#allocation5] sm:$0xff] %v747
    %780 = vst [vmem:[#allocation5 + $0x8] sm:$0xff] %v748
    %781 = vst [vmem:[#allocation5 + $0x10] sm:$0xff] %v749
    %782 = vst [vmem:[#allocation5 + $0x18] sm:$0xff] %v750
    %783 = vst [vmem:[#allocation5 + $0x20] sm:$0xff] %v751
    %784 = vst [vmem:[#allocation5 + $0x28] sm:$0xff] %v752
    %785 = vst [vmem:[#allocation5 + $0x30] sm:$0xff] %v753
    %786 = vst [vmem:[#allocation5 + $0x38] sm:$0xff] %v754
    %787 = vst [vmem:[#allocation5 + $0x40] sm:$0xff] %v755
    %788 = vst [vmem:[#allocation5 + $0x48] sm:$0xff] %v756
    %789 = vst [vmem:[#allocation5 + $0x50] sm:$0xff] %v757
    %790 = vst [vmem:[#allocation5 + $0x58] sm:$0xff] %v758
    %791 = vst [vmem:[#allocation5 + $0x60] sm:$0xff] %v759
    %792 = vst [vmem:[#allocation5 + $0x68] sm:$0xff] %v760
    %793 = vst [vmem:[#allocation5 + $0x70] sm:$0xff] %v761
    %794 = vst [vmem:[#allocation5 + $0x78] sm:$0xff] %v762
    %795 = vst [vmem:[#allocation5 + $0x80] sm:$0xff] %v763
    %796 = vst [vmem:[#allocation5 + $0x88] sm:$0xff] %v764
    %797 = vst [vmem:[#allocation5 + $0x90] sm:$0xff] %v765
    %798 = vst [vmem:[#allocation5 + $0x98] sm:$0xff] %v766
    %799 = vst [vmem:[#allocation5 + $0xa0] sm:$0xff] %v767
    %800 = vst [vmem:[#allocation5 + $0xa8] sm:$0xff] %v768
    %801 = vst [vmem:[#allocation5 + $0xb0] sm:$0xff] %v769
    %802 = vst [vmem:[#allocation5 + $0xb8] sm:$0xff] %v770
    %803 = vst [vmem:[#allocation5 + $0xc0] sm:$0xff] %v771
    %804 = vst [vmem:[#allocation5 + $0xc8] sm:$0xff] %v772
    %805 = vst [vmem:[#allocation5 + $0xd0] sm:$0xff] %v773
    %806 = vst [vmem:[#allocation5 + $0xd8] sm:$0xff] %v774
    %807 = vst [vmem:[#allocation5 + $0xe0] sm:$0xff] %v775
    %808 = vst [vmem:[#allocation5 + $0xe8] sm:$0xff] %v776
    %809 = vst [vmem:[#allocation5 + $0xf0] sm:$0xff] %v777
    %810 = vst [vmem:[#allocation5 + $0xf8] sm:$0xff] %v778
    // Predicated region
    $region22: #{tpu_custom_call.1} parent=1 // pred_check
      _
    $region23: #{tpu_custom_call.1} parent=1 // pred_check_branch
      %812 = sbr.rel (0) target = $region25
    $region24: #{tpu_custom_call.1} parent=1 // pred_region
      %s814 = ssub.s32 4096, 4096
      %815 = vsyncadd [#allocation4], %s814
      %s816 = sshll.u32 [#allocation5], 4
      %s817 = int_to_ptr.vmem [resolvable:$true] %s816
      %822 = dma.vmem_to_hbm [thread:$0]  %s817, 4096, %s4, [#allocation4], 128, 128, 8
    $region25: #{tpu_custom_call.1} parent=1 // pred_fallthru
      _
    // Predicated region
    $region26: #{tpu_custom_call.1} parent=1 // pred_check
      _
    $region27: #{tpu_custom_call.1} parent=1 // pred_check_branch
      %824 = sbr.rel (0) target = $region29
    $region28: #{tpu_custom_call.1} parent=1 // pred_region
      %825 = dma.done [#allocation4], 4096
    $region29: #{tpu_custom_call.1} parent=1 // pred_fallthru
      _
    %826 = vsyncpa [#allocation3], 1
    %827 = vsyncpa [#allocation4], 1

</llo_original>
